<compile_context>
chip_gen: v5e
topology: v5e:2x2
jax: 0.10.0
libtpu: 0.0.40
codegen_flags: <defaults>
</compile_context>

<pallas_src>
import jax
import jax.numpy as jnp
import numpy as np
from jax.experimental import pallas as pl
from jax.experimental.pallas import tpu as pltpu


def _kv_kernel(kt_ref, v_ref, wt_ref, kv_ref, acc_ref):
    """acc[r, d] += sum_n exp(W^T K^T)[r, n] * V[n, d] over sequence tiles."""
    ni = pl.program_id(1)

    @pl.when(ni == 0)
    def _():
        acc_ref[...] = jnp.zeros_like(acc_ref)

    kt = kt_ref[0]                                     # (D, tn), input dtype
    v = v_ref[0]                                       # (tn, D)
    w = wt_ref[...].astype(kt.dtype)                   # (R, D)
    # exp random features, transposed layout: (R, tn), f32 accumulate on MXU.
    wk = jnp.exp(jnp.dot(w, kt, preferred_element_type=jnp.float32))
    # (R, tn) @ (tn, D) -> (R, D): standard NN matmul, f32 accumulate.
    acc_ref[...] += jnp.dot(wk.astype(v.dtype), v,
                            preferred_element_type=jnp.float32)

    @pl.when(ni == pl.num_programs(1) - 1)
    def _():
        kv_ref[0] = acc_ref[...].astype(kv_ref.dtype)


def _qkv_kernel(q_ref, kv_ref, w_ref, o_ref):
    """out_tile = exp(Q_tile @ W) @ kv[b], one full-tile store."""
    q = q_ref[0]                                       # (tq, D)
    w = w_ref[...].astype(q.dtype)                     # (D, R)
    wq = jnp.exp(jnp.dot(q, w, preferred_element_type=jnp.float32))   # (tq, R)
    kv = kv_ref[0]                                     # (R, D), f32
    out = jnp.dot(wq.astype(kv.dtype), kv, preferred_element_type=jnp.float32)
    o_ref[0] = out.astype(o_ref.dtype)


def kernel_attention_forward(Q, K, V, W, *, n_tile=1024, q_tile=1024,
                             vmem_limit_bytes=48 * 1024 * 1024):
    """Pallas implementation of KernalAttention.forward (default f1/f2)."""
    B, N, H, D = Q.shape
    Dw, R = W.shape
    assert K.shape == (B, N, D) and V.shape == (B, N, D) and Dw == D
    itemsize = jnp.dtype(Q.dtype).itemsize

    # ---------- Stage 1: kv[b] = exp(K[b] @ W)^T @ V[b] -> (B, R, D) ----------
    tn = min(n_tile, N)
    n_blocks = pl.cdiv(N, tn)
    Np = n_blocks * tn
    if Np != N:
        # Padded V rows are zero -> no contribution to the kv sum.
        K_p = jnp.pad(K, ((0, 0), (0, Np - N), (0, 0)))
        V_p = jnp.pad(V, ((0, 0), (0, Np - N), (0, 0)))
    else:
        K_p, V_p = K, V
    # Host-side layout glue (one pass over K / tiny W) so the kernel runs only
    # plain NN MXU matmuls with no in-kernel transposes.
    K_T = jnp.swapaxes(K_p, 1, 2)                       # (B, D, Np)
    W_T = jnp.swapaxes(W, 0, 1)                         # (R, D)

    kv_cost = pl.CostEstimate(
        flops=2 * B * Np * D * R + 2 * B * Np * R * D,
        transcendentals=B * Np * R,
        bytes_accessed=(2 * B * Np * D + D * R) * itemsize + B * R * D * 4)

    kv = pl.pallas_call(
        _kv_kernel,
        out_shape=jax.ShapeDtypeStruct((B, R, D), jnp.float32),
        grid_spec=pltpu.PrefetchScalarGridSpec(
            num_scalar_prefetch=0,
            grid=(B, n_blocks),
            in_specs=[
                pl.BlockSpec((1, D, tn), lambda b, n: (b, 0, n)),   # K^T tile
                pl.BlockSpec((1, tn, D), lambda b, n: (b, n, 0)),   # V tile
                pl.BlockSpec((R, D), lambda b, n: (0, 0)),          # W^T (resident)
            ],
            out_specs=pl.BlockSpec((1, R, D), lambda b, n: (b, 0, 0)),
            scratch_shapes=[pltpu.VMEM((R, D), jnp.float32)],
        ),
        compiler_params=pltpu.CompilerParams(
            dimension_semantics=("parallel", "arbitrary"),
            vmem_limit_bytes=vmem_limit_bytes),
        cost_estimate=kv_cost,
    )(K_T, V_p, W_T)

    # ---------- Stage 2: out = exp(Q @ W) @ kv, tokens = flattened (N*H) ------
    T = N * H
    Q2 = Q.reshape(B, T, D)                             # contiguous, no copy
    tq = min(q_tile, T)
    t_blocks = pl.cdiv(T, tq)
    Tp = t_blocks * tq
    if Tp != T:
        Q2 = jnp.pad(Q2, ((0, 0), (0, Tp - T), (0, 0)))

    qkv_cost = pl.CostEstimate(
        flops=2 * B * Tp * D * R + 2 * B * Tp * R * D,
        transcendentals=B * Tp * R,
        bytes_accessed=(2 * B * Tp * D + D * R) * itemsize + B * R * D * 4)

    out = pl.pallas_call(
        _qkv_kernel,
        out_shape=jax.ShapeDtypeStruct((B, Tp, D), Q.dtype),
        grid_spec=pltpu.PrefetchScalarGridSpec(
            num_scalar_prefetch=0,
            grid=(B, t_blocks),
            in_specs=[
                pl.BlockSpec((1, tq, D), lambda b, t: (b, t, 0)),   # Q tile
                pl.BlockSpec((1, R, D), lambda b, t: (b, 0, 0)),    # kv[b] (resident)
                pl.BlockSpec((D, R), lambda b, t: (0, 0)),          # W (resident)
            ],
            out_specs=pl.BlockSpec((1, tq, D), lambda b, t: (b, t, 0)),
        ),
        compiler_params=pltpu.CompilerParams(
            dimension_semantics=("parallel", "parallel"),
            vmem_limit_bytes=vmem_limit_bytes),
        cost_estimate=qkv_cost,
    )(Q2, kv, W)

    if Tp != T:
        out = out[:, :T, :]
    return out.reshape(B, N, H, D)


def kernel_attention_ref(Q, K, V, W):
    """Pure-JAX mirror of KernalAttention.forward with default f1/f2 = exp(x @ W)."""
    wk = jnp.exp(jnp.einsum('bnd,dr->bnr', K, W))
    kv = jnp.einsum('bnr,bnd->brd', wk, V)
    wq = jnp.exp(jnp.einsum('bnhd,dr->bnhr', Q, W))
    return jnp.einsum('bnhr,brd->bnhd', wq, kv)


if __name__ == "__main__":
    # Small shapes: batch=2, seq=128, heads=2, d=32, r=16 random features.
    B, N, H, D, R = 2, 128, 2, 32, 16

    key = jax.random.PRNGKey(0)
    kq, kk, kvv, kw, kn = jax.random.split(key, 5)

    # drawVectors(): W = DrawOrthonormalMatrix(r, d)^T + N(0, 0.01) noise.
    # Orthonormal columns via QR (r <= d), deterministic from PRNGKey(0).
    Worth, _ = jnp.linalg.qr(jax.random.normal(kw, (D, R), jnp.float32))
    W = Worth + 0.01 * jax.random.normal(kn, (D, R), jnp.float32)

    Q = jax.random.normal(kq, (B, N, H, D), jnp.float32)
    K = jax.random.normal(kk, (B, N, D), jnp.float32)
    V = jax.random.normal(kvv, (B, N, D), jnp.float32)

    out = kernel_attention_forward(Q, K, V, W)
    out = jax.block_until_ready(out)

    ref = kernel_attention_ref(Q, K, V, W)
    assert out.shape == ref.shape == (B, N, H, D)
    np.testing.assert_allclose(np.asarray(out), np.asarray(ref),
                               rtol=2e-4, atol=2e-4)
    print("KERNEL_OK")
</pallas_src>

<mosaic_0001>
module attributes {stable_mosaic.version = 11 : i64} {
  func.func @_kv_kernel(%arg0: i32, %arg1: i32, %arg2: memref<1x32x128xf32, #tpu.memory_space<vmem>>, %arg3: memref<1x128x32xf32, #tpu.memory_space<vmem>>, %arg4: memref<16x32xf32, #tpu.memory_space<vmem>>, %arg5: memref<1x16x32xf32, #tpu.memory_space<vmem>>, %arg6: memref<16x32xf32, #tpu.memory_space<vmem>>) attributes {dimension_semantics = [#tpu.dimension_semantics<parallel>, #tpu.dimension_semantics<arbitrary>], iteration_bounds = array<i64: 2, 1>, scalar_prefetch = 0 : i64, scratch_operands = 1 : i64, tpu.core_type = #tpu.core_type<tc>, window_params = [{transform_indices = @transform_0, window_bounds = array<i64: 1, 32, 128>}, {transform_indices = @transform_1, window_bounds = array<i64: 1, 128, 32>}, {pipeline_mode = #tpu.pipeline_mode<synchronous>, transform_indices = @transform_2, window_bounds = array<i64: 16, 32>}, {transform_indices = @transform_3, window_bounds = array<i64: 1, 16, 32>}]} {
    %c0_i32 = arith.constant 0 : i32
    %0 = arith.cmpi eq, %arg1, %c0_i32 : i32
    %1 = arith.extui %0 : i1 to i32
    %c0_i32_0 = arith.constant 0 : i32
    %2 = arith.cmpi ne, %1, %c0_i32_0 : i32
    scf.if %2 {
      %cst_15 = arith.constant 0.000000e+00 : f32
      %17 = vector.broadcast %cst_15 : f32 to vector<16x32xf32>
      %c0_16 = arith.constant 0 : index
      %c0_17 = arith.constant 0 : index
      %18 = vector.load %arg6[%c0_16, %c0_17] : memref<16x32xf32, #tpu.memory_space<vmem>>, vector<16x32xf32>
      tpu.vector_store %arg6[%c0_16, %c0_17], %17 {strides = array<i32>} : memref<16x32xf32, #tpu.memory_space<vmem>>, vector<16x32xf32>,
    } else {
    }
    %c0 = arith.constant 0 : index
    %c0_1 = arith.constant 0 : index
    %c0_2 = arith.constant 0 : index
    %3 = vector.load %arg2[%c0, %c0_1, %c0_2] : memref<1x32x128xf32, #tpu.memory_space<vmem>>, vector<1x32x128xf32>
    %4 = vector.shape_cast %3 : vector<1x32x128xf32> to vector<32x128xf32>
    %c0_3 = arith.constant 0 : index
    %c0_4 = arith.constant 0 : index
    %c0_5 = arith.constant 0 : index
    %5 = vector.load %arg3[%c0_3, %c0_4, %c0_5] : memref<1x128x32xf32, #tpu.memory_space<vmem>>, vector<1x128x32xf32>
    %6 = vector.shape_cast %5 : vector<1x128x32xf32> to vector<128x32xf32>
    %c0_6 = arith.constant 0 : index
    %c0_7 = arith.constant 0 : index
    %7 = vector.load %arg4[%c0_6, %c0_7] : memref<16x32xf32, #tpu.memory_space<vmem>>, vector<16x32xf32>
    %cst = arith.constant dense<0.000000e+00> : vector<16x128xf32>
    %8 = tpu.matmul %7, %4, %cst {dimension_numbers = #tpu.dot_dimension_numbers<[1], [0], [0], [1], [0, 0, 1, 1], [], []>} : vector<16x32xf32>, vector<32x128xf32>, vector<16x128xf32> -> vector<16x128xf32>
    %9 = math.exp %8 : vector<16x128xf32>
    %c0_8 = arith.constant 0 : index
    %c0_9 = arith.constant 0 : index
    %10 = vector.load %arg6[%c0_8, %c0_9] : memref<16x32xf32, #tpu.memory_space<vmem>>, vector<16x32xf32>
    %cst_10 = arith.constant dense<0.000000e+00> : vector<16x32xf32>
    %11 = tpu.matmul %9, %6, %cst_10 {dimension_numbers = #tpu.dot_dimension_numbers<[1], [0], [0], [1], [0, 0, 1, 1], [], []>} : vector<16x128xf32>, vector<128x32xf32>, vector<16x32xf32> -> vector<16x32xf32>
    %12 = arith.addf %10, %11 : vector<16x32xf32>
    %c0_11 = arith.constant 0 : index
    %c0_12 = arith.constant 0 : index
    %13 = vector.load %arg6[%c0_11, %c0_12] : memref<16x32xf32, #tpu.memory_space<vmem>>, vector<16x32xf32>
    tpu.vector_store %arg6[%c0_11, %c0_12], %12 {strides = array<i32>} : memref<16x32xf32, #tpu.memory_space<vmem>>, vector<16x32xf32>,
    %c0_i32_13 = arith.constant 0 : i32
    %14 = arith.cmpi eq, %arg1, %c0_i32_13 : i32
    %15 = arith.extui %14 : i1 to i32
    %c0_i32_14 = arith.constant 0 : i32
    %16 = arith.cmpi ne, %15, %c0_i32_14 : i32
    scf.if %16 {
      %c0_15 = arith.constant 0 : index
      %c0_16 = arith.constant 0 : index
      %17 = vector.load %arg6[%c0_15, %c0_16] : memref<16x32xf32, #tpu.memory_space<vmem>>, vector<16x32xf32>
      %c0_17 = arith.constant 0 : index
      %c0_18 = arith.constant 0 : index
      %c0_19 = arith.constant 0 : index
      %18 = vector.load %arg5[%c0_17, %c0_18, %c0_19] : memref<1x16x32xf32, #tpu.memory_space<vmem>>, vector<1x16x32xf32>
      %19 = vector.shape_cast %18 : vector<1x16x32xf32> to vector<16x32xf32>
      %20 = vector.shape_cast %17 : vector<16x32xf32> to vector<1x16x32xf32>
      tpu.vector_store %arg5[%c0_17, %c0_18, %c0_19], %20 {strides = array<i32>} : memref<1x16x32xf32, #tpu.memory_space<vmem>>, vector<1x16x32xf32>,
    } else {
    }
    return
  }
  func.func @transform_0(%arg0: i32, %arg1: i32) -> (i32, i32, i32) {
    %c0_i32 = arith.constant 0 : i32
    %c0_i32_0 = arith.constant 0 : i32
    return %arg0, %c0_i32, %arg1 : i32, i32, i32
  }
  func.func @transform_1(%arg0: i32, %arg1: i32) -> (i32, i32, i32) {
    %c0_i32 = arith.constant 0 : i32
    %c0_i32_0 = arith.constant 0 : i32
    return %arg0, %arg1, %c0_i32 : i32, i32, i32
  }
  func.func @transform_2(%arg0: i32, %arg1: i32) -> (i32, i32) {
    %c0_i32 = arith.constant 0 : i32
    %c0_i32_0 = arith.constant 0 : i32
    %c0_i32_1 = arith.constant 0 : i32
    return %c0_i32, %c0_i32_0 : i32, i32
  }
  func.func @transform_3(%arg0: i32, %arg1: i32) -> (i32, i32, i32) {
    %c0_i32 = arith.constant 0 : i32
    %c0_i32_0 = arith.constant 0 : i32
    %c0_i32_1 = arith.constant 0 : i32
    return %arg0, %c0_i32, %c0_i32_0 : i32, i32, i32
  }
}

</mosaic_0001>

<llo_original>
// kernel: tpu_custom_call.1
$region0: #{tpu_custom_call.1}
  #allocation0 [shape = 'u32[]', space=smem, size = 0x4, offset = 0x4, fixed_abs, tag = 'smem constant byte address 0x4 - core index']
  #allocation1 [shape = 'u32[72,128]{1,0:T(1,128)}', space=vmem, size = 0x9000, scoped, tag = 'internal scratch']
  #allocation2 [shape = 'f32[16,32]{1,0:T(8,128)}', space=vmem, size = 0x2000, scoped, tag = 'scratch operand']
  %s0 = inlined_call_operand.vmem [shape: f32[2,32,128], index: 0, kind: input, shape index: {}]
  %s1 = inlined_call_operand.vmem [shape: f32[2,128,32], index: 1, kind: input, shape index: {}]
  %s2 = inlined_call_operand.vmem [shape: f32[16,32], index: 2, kind: input, shape index: {}]
  %s3 = inlined_call_operand.hbm [shape: f32[2,16,32], index: 3, kind: output, shape index: {}]
  %s4 = sld [smem:[#allocation0]]
  $region53: #{tpu_custom_call.1} parent=0
    _
  %s6 = ssub.s32 1, %s4
  %s7 = scalar_select 0, %s6, %s4
  $region1: #{tpu_custom_call.1} parent=0
    #allocation3 [shape = 'u8[16384]{0}', space=vmem, size = 0x4000, scoped, tag = 'output window, operand 0']
    #allocation4 [shape = 's32[2]{0}', space=sflag, size = 0x8, scoped, tag = 'scoped memory for tpu_custom_call.1']
    %8 = vsyncpa [#allocation4], 0
    %s9 = scalar_lea.sflag [#allocation4], 1
    %10 = vsyncpa %s9, 0
    loop: start=0, step=1, limit=4
    $region2: #{tpu_custom_call.1} parent=1 // loop_pre_header
      _
    $region3: #{tpu_custom_call.1} parent=1 // loop_header
      %s12 = sphi 0, %s16
      %p13 = scmp.ge.s32.totalorder %s12, 4
      %s19 = sphi 0, %s31
      %s20 = sphi 0, %s27
      %s21 = sphi 0, %s19
      %s22 = sphi 0, %s20
      %s23 = sphi 0, %s21
      %s24 = sphi 0, %s22
      %s36 = sphi 0, %s38
      %s39 = sphi 0, %s36
      %s40 = sphi 0, %s39
      %s56 = sphi 0, %s40
      %s64 = sphi 0, %s66
      %s67 = sphi 0, %s64
      %s68 = sphi 0, %s67
      %s84 = sphi 0, %s68
      %s88 = sphi 0, %s88
      %s90 = sphi 0, %s88
      %s91 = sphi 0, %s90
      %s105 = sphi 0, %s91
      %s111 = sphi 0, %s113
      %s114 = sphi 0, %s111
      %s115 = sphi 0, %s114
      %s131 = sphi 0, %s115
    $region4: #{tpu_custom_call.1} parent=1 // loop_header_branch
      %15 = sbr.rel (%p13) target = $region8
    $region5: #{tpu_custom_call.1} parent=1 // loop_body
      %s17 = ssub.s32 %s12, 1
      %s18 = ssub.s32 %s12, 2
      %s25 = sadd.s32 1, %s20
      %p26 = scmp.ge.s32.totalorder %s25, 1
      %s27 = scalar_select %p26, 0, %s25
      %s28 = sadd.s32 1, %s19
      %s29 = scalar_select %p26, %s28, %s19
      %p30 = scmp.ge.s32.totalorder %s29, 2
      %s31 = scalar_select %p30, 0, %s29
      %s32 = ssub.s32 %s19, %s31
      %s33 = ssub.s32 %s20, %s27
      %s34 = sor.u32 %s32, %s33
      %p35 = scmp.eq.s32.totalorder %s34, 0
      %s37 = sadd.s32 %s36, 1
      %s38 = scalar_select %p35, %s36, %s37
      %p41 = pneg %p35
      %p42 = scmp.eq.s32.totalorder %s12, 1
      %p43 = por %p41, %p42
      %p44 = scmp.ne.s32.totalorder %s36, %s39
      %p45 = scmp.eq.s32.totalorder %s12, 0
      %p46 = por %p44, %p45
      %p47 = scmp.ne.s32.totalorder %s36, %s39
      %p48 = scmp.eq.s32.totalorder %s17, 1
      %p49 = por %p47, %p48
      %p50 = scmp.ne.s32.totalorder %s39, %s40
      %p51 = scmp.eq.s32.totalorder %s17, 0
      %p52 = por %p50, %p51
      %p53 = scmp.ne.s32.totalorder %s39, %s40
      %p54 = scmp.eq.s32.totalorder %s18, 1
      %p55 = por %p53, %p54
      %p57 = scmp.ne.s32.totalorder %s40, %s56
      %p58 = scmp.eq.s32.totalorder %s18, 0
      %p59 = por %p57, %p58
      %s60 = ssub.s32 %s19, %s31
      %s61 = ssub.s32 %s20, %s27
      %s62 = sor.u32 %s60, %s61
      %p63 = scmp.eq.s32.totalorder %s62, 0
      %s65 = sadd.s32 %s64, 1
      %s66 = scalar_select %p63, %s64, %s65
      %p69 = pneg %p63
      %p70 = scmp.eq.s32.totalorder %s12, 1
      %p71 = por %p69, %p70
      %p72 = scmp.ne.s32.totalorder %s64, %s67
      %p73 = scmp.eq.s32.totalorder %s12, 0
      %p74 = por %p72, %p73
      %p75 = scmp.ne.s32.totalorder %s64, %s67
      %p76 = scmp.eq.s32.totalorder %s17, 1
      %p77 = por %p75, %p76
      %p78 = scmp.ne.s32.totalorder %s67, %s68
      %p79 = scmp.eq.s32.totalorder %s17, 0
      %p80 = por %p78, %p79
      %p81 = scmp.ne.s32.totalorder %s67, %s68
      %p82 = scmp.eq.s32.totalorder %s18, 1
      %p83 = por %p81, %p82
      %p85 = scmp.ne.s32.totalorder %s68, %s84
      %p86 = scmp.eq.s32.totalorder %s18, 0
      %p87 = por %p85, %p86
      %s89 = sadd.s32 %s88, 1
      %p92 = scmp.eq.s32.totalorder %s12, 1
      %p93 = scmp.ne.s32.totalorder %s88, %s90
      %p94 = scmp.eq.s32.totalorder %s12, 0
      %p95 = por %p93, %p94
      %p96 = scmp.ne.s32.totalorder %s88, %s90
      %p97 = scmp.eq.s32.totalorder %s17, 1
      %p98 = por %p96, %p97
      %p99 = scmp.ne.s32.totalorder %s90, %s91
      %p100 = scmp.eq.s32.totalorder %s17, 0
      %p101 = por %p99, %p100
      %p102 = scmp.ne.s32.totalorder %s90, %s91
      %p103 = scmp.eq.s32.totalorder %s18, 1
      %p104 = por %p102, %p103
      %p106 = scmp.ne.s32.totalorder %s91, %s105
      %p107 = scmp.eq.s32.totalorder %s18, 0
      %p108 = por %p106, %p107
      %s109 = ssub.s32 %s19, %s31
      %p110 = scmp.eq.s32.totalorder %s109, 0
      %s112 = sadd.s32 %s111, 1
      %s113 = scalar_select %p110, %s111, %s112
      %p116 = pneg %p110
      %p117 = scmp.eq.s32.totalorder %s12, 1
      %p118 = por %p116, %p117
      %p119 = scmp.ne.s32.totalorder %s111, %s114
      %p120 = scmp.eq.s32.totalorder %s12, 0
      %p121 = por %p119, %p120
      %p122 = scmp.ne.s32.totalorder %s111, %s114
      %p123 = scmp.eq.s32.totalorder %s17, 1
      %p124 = por %p122, %p123
      %p125 = scmp.ne.s32.totalorder %s114, %s115
      %p126 = scmp.eq.s32.totalorder %s17, 0
      %p127 = por %p125, %p126
      %p128 = scmp.ne.s32.totalorder %s114, %s115
      %p129 = scmp.eq.s32.totalorder %s18, 1
      %p130 = por %p128, %p129
      %p132 = scmp.ne.s32.totalorder %s115, %s131
      %p133 = scmp.eq.s32.totalorder %s18, 0
      %p134 = por %p132, %p133
      %p135 = scmp.le.s32.totalorder 1, %s12
      %p136 = scmp.lt.s32.totalorder %s12, 3
      %p137 = pnand %p135, %p136
      %p138 = pneg %p137
      // Predicated region
      $region9: #{tpu_custom_call.1} parent=5 // pred_check
        _
      $region10: #{tpu_custom_call.1} parent=5 // pred_check_branch
        %140 = sbr.rel (%p137) target = $region12
      $region11: #{tpu_custom_call.1} parent=5 // pred_region
        %s141 = ssub.s32 %s12, 1
        // Predicated region
        $region13: #{tpu_custom_call.1} parent=11 // pred_check
          %p142 = pneg %p101
        $region14: #{tpu_custom_call.1} parent=11 // pred_check_branch
          %144 = sbr.rel (%p142) target = $region16
        $region15: #{tpu_custom_call.1} parent=11 // pred_region
          _
        $region16: #{tpu_custom_call.1} parent=11 // pred_fallthru
          _
      $region12: #{tpu_custom_call.1} parent=5 // pred_fallthru
        _
      %p145 = scmp.lt.s32.totalorder %s12, 2
      // Predicated region
      $region17: #{tpu_custom_call.1} parent=5 // pred_check
        %p146 = pneg %p145
      $region18: #{tpu_custom_call.1} parent=5 // pred_check_branch
        %148 = sbr.rel (%p146) target = $region20
      $region19: #{tpu_custom_call.1} parent=5 // pred_region
        // Predicated region
        $region21: #{tpu_custom_call.1} parent=19 // pred_check
          %p149 = pneg %p46
        $region22: #{tpu_custom_call.1} parent=19 // pred_check_branch
          %151 = sbr.rel (%p149) target = $region24
        $region23: #{tpu_custom_call.1} parent=19 // pred_region
          %p152 = scmp.lt.s32.totalorder %s19, 1
          %s153 = scalar_select %p152, %s19, 1
          %p154 = scmp.lt.s32.totalorder %s20, 0
          %s155 = scalar_select %p154, %s20, 0
          %s156 = smul.addr %s153, 4
          %s157 = sadd.s32 %s155, %s156
          %s158 = smul.addr %s157, 8
          %s159 = scalar_lea.vmem %s0, %s158
        $region24: #{tpu_custom_call.1} parent=19 // pred_fallthru
          _
        // Predicated region
        $region25: #{tpu_custom_call.1} parent=19 // pred_check
          %p160 = pneg %p74
        $region26: #{tpu_custom_call.1} parent=19 // pred_check_branch
          %162 = sbr.rel (%p160) target = $region28
        $region27: #{tpu_custom_call.1} parent=19 // pred_region
          %s163 = smul.u32 16, %s20
          %p164 = scmp.lt.s32.totalorder %s19, 1
          %s165 = scalar_select %p164, %s19, 1
          %p166 = scmp.lt.s32.totalorder %s163, 15
          %s167 = scalar_select %p166, %s163, 15
          %s168 = smul.addr %s165, 16
          %s169 = sadd.s32 %s167, %s168
          %s170 = smul.addr %s169, 8
          %s171 = scalar_lea.vmem %s1, %s170
          %s172 = smul.u32 16, %s20
        $region28: #{tpu_custom_call.1} parent=19 // pred_fallthru
          _
      $region20: #{tpu_custom_call.1} parent=5 // pred_fallthru
        _
      %p173 = scmp.le.s32.totalorder 1, %s12
      %p174 = scmp.lt.s32.totalorder %s12, 3
      %p175 = pnand %p173, %p174
      %p176 = pneg %p175
      // Predicated region
      $region29: #{tpu_custom_call.1} parent=5 // pred_check
        _
      $region30: #{tpu_custom_call.1} parent=5 // pred_check_branch
        %178 = sbr.rel (%p175) target = $region32
      $region31: #{tpu_custom_call.1} parent=5 // pred_region
        %s179 = ssub.s32 %s12, 1
        %p180 = scmp.lt.s32.totalorder %s21, 1
        %s181 = scalar_select %p180, %s21, 1
        %p182 = scmp.lt.s32.totalorder %s22, 0
        %s183 = scalar_select %p182, %s22, 0
        %s184 = smul.addr %s181, 4
        %s185 = sadd.s32 %s183, %s184
        %s186 = smul.addr %s185, 8
        %s187 = scalar_lea.vmem %s0, %s186
        %p188 = pneg %p52
        %p189 = pneg %p49
        %s190 = smul.u32 16, %s22
        %p191 = scmp.lt.s32.totalorder %s21, 1
        %s192 = scalar_select %p191, %s21, 1
        %p193 = scmp.lt.s32.totalorder %s190, 15
        %s194 = scalar_select %p193, %s190, 15
        %s195 = smul.addr %s192, 16
        %s196 = sadd.s32 %s194, %s195
        %s197 = smul.addr %s196, 8
        %s198 = scalar_lea.vmem %s1, %s197
        %p199 = pneg %p80
        %p200 = pneg %p77
        %p201 = pneg %p101
        %p202 = pneg %p98
        %p203 = pneg %p127
        %p204 = pneg %p124
        %s205 = sand.u32 %s114, 1
        %s206 = scalar_lea.sflag [#allocation4], %s205
        %s207 = sand.u32 %s114, 1
        %s208 = smul.addr %s207, 16
        %s209 = scalar_lea.vmem [#allocation3], %s208
        %p210 = scmp.lt.s32.totalorder %s21, 1
        %s211 = scalar_select %p210, %s21, 1
        %p212 = scmp.lt.s32.totalorder %s22, 0
        %s213 = scalar_select %p212, %s22, 0
        %s214 = smul.addr %s211, 4
        %s215 = sadd.s32 %s213, %s214
        %s216 = smul.addr %s215, 8
        %s217 = scalar_lea.vmem %s0, %s216
        %s218 = smul.u32 16, %s22
        %p219 = scmp.lt.s32.totalorder %s21, 1
        %s220 = scalar_select %p219, %s21, 1
        %p221 = scmp.lt.s32.totalorder %s218, 15
        %s222 = scalar_select %p221, %s218, 15
        %s223 = smul.addr %s220, 16
        %s224 = sadd.s32 %s222, %s223
        %s225 = smul.addr %s224, 8
        %s226 = scalar_lea.vmem %s1, %s225
        %s227 = smul.u32 16, %s22
        %p228 = scmp.eq.s32.totalorder %s22, 0
        // Predicated region
        $region33: #{tpu_custom_call.1} parent=31 // pred_check
          %p229 = pneg %p228
        $region34: #{tpu_custom_call.1} parent=31 // pred_check_branch
          %231 = sbr.rel (%p229) target = $region36
        $region35: #{tpu_custom_call.1} parent=31 // pred_region
          %vm232 = vcmask 261120
          %233 = vst.msk [vmem:[#allocation2] sm:$0xff] %vm232, 0.0
          %234 = vst.msk [vmem:[#allocation2 + $0x8] sm:$0xff] %vm232, 0.0
        $region36: #{tpu_custom_call.1} parent=31 // pred_fallthru
          _
        %v235 = vld [vmem:[%s217] sm:$0xff]
        %v236 = vld [vmem:[%s217 + $0x8] sm:$0xff]
        %v237 = vld [vmem:[%s217 + $0x10] sm:$0xff]
        %v238 = vld [vmem:[%s217 + $0x18] sm:$0xff]
        %v239 = vld [vmem:[%s226] sm:$0xff]
        %v240 = vld [vmem:[%s226 + $0x8] sm:$0xff]
        %v241 = vld [vmem:[%s226 + $0x10] sm:$0xff]
        %v242 = vld [vmem:[%s226 + $0x18] sm:$0xff]
        %v243 = vld [vmem:[%s226 + $0x20] sm:$0xff]
        %v244 = vld [vmem:[%s226 + $0x28] sm:$0xff]
        %v245 = vld [vmem:[%s226 + $0x30] sm:$0xff]
        %v246 = vld [vmem:[%s226 + $0x38] sm:$0xff]
        %v247 = vld [vmem:[%s226 + $0x40] sm:$0xff]
        %v248 = vld [vmem:[%s226 + $0x48] sm:$0xff]
        %v249 = vld [vmem:[%s226 + $0x50] sm:$0xff]
        %v250 = vld [vmem:[%s226 + $0x58] sm:$0xff]
        %v251 = vld [vmem:[%s226 + $0x60] sm:$0xff]
        %v252 = vld [vmem:[%s226 + $0x68] sm:$0xff]
        %v253 = vld [vmem:[%s226 + $0x70] sm:$0xff]
        %v254 = vld [vmem:[%s226 + $0x78] sm:$0xff]
        %v255 = vld [vmem:[%s2] sm:$0xff]
        %v256 = vld [vmem:[%s2 + $0x8] sm:$0xff]
        %vm257 = vcmask 261120
        %v259 = vsel %vm257, %v255, 0
        %v262 = vsel %vm257, %v256, 0
        %264 = vmatpush.msra.mxu0 0.0
        %265 = vmatpush.msra.mxu0 0.0
        %266 = vmatpush.msra.mxu0 0.0
        %267 = vmatpush.msra.mxu0 0.0
        %268 = vmatpush.msra.mxu0 0.0
        %269 = vmatpush.msra.mxu0 0.0
        %270 = vmatpush.msra.mxu0 0.0
        %271 = vmatpush.msra.mxu0 0.0
        %272 = vmatpush.msra.mxu0 0.0
        %273 = vmatpush.msra.mxu0 0.0
        %274 = vmatpush.msra.mxu0 0.0
        %275 = vmatpush.msra.mxu0 0.0
        %276 = vmatpush.msra.mxu0 %v238
        %277 = vmatpush.msra.mxu0 %v237
        %278 = vmatpush.msra.mxu0 %v236
        %279 = vmatpush.msra.mxu0 %v235
        %280 = vmatmul.f32.gmra.mxu0 %v259
        %v281 = vpop.f32.mrf.mxu0
        %v282 = vadd.f32 0.0, %v281
        %283 = vmatmul.f32.gmra.mxu0 %v262
        %v284 = vpop.f32.mrf.mxu0
        %v285 = vadd.f32 0.0, %v284
        %286 = vdwg.mxu0
        %v287 = vmul.f32 %v282, 1.442695
        %v288 = vpow.pop %v287
        %v289 = vmul.f32 %v285, 1.442695
        %v290 = vpow.pop %v289
        %v291 = vld [vmem:[#allocation2] sm:$0xff]
        %v292 = vld [vmem:[#allocation2 + $0x8] sm:$0xff]
        %293 = vmatpush.msra.mxu0 %v254
        %294 = vmatpush.msra.mxu0 %v253
        %295 = vmatpush.msra.mxu0 %v252
        %296 = vmatpush.msra.mxu0 %v251
        %297 = vmatpush.msra.mxu0 %v250
        %298 = vmatpush.msra.mxu0 %v249
        %299 = vmatpush.msra.mxu0 %v248
        %300 = vmatpush.msra.mxu0 %v247
        %301 = vmatpush.msra.mxu0 %v246
        %302 = vmatpush.msra.mxu0 %v245
        %303 = vmatpush.msra.mxu0 %v244
        %304 = vmatpush.msra.mxu0 %v243
        %305 = vmatpush.msra.mxu0 %v242
        %306 = vmatpush.msra.mxu0 %v241
        %307 = vmatpush.msra.mxu0 %v240
        %308 = vmatpush.msra.mxu0 %v239
        %309 = vmatmul.f32.gmra.mxu0 %v288
        %v310 = vpop.f32.mrf.mxu0
        %v311 = vadd.f32 0.0, %v310
        %312 = vmatmul.f32.gmra.mxu0 %v290
        %v313 = vpop.f32.mrf.mxu0
        %v314 = vadd.f32 0.0, %v313
        %315 = vdwg.mxu0
        %v316 = vadd.f32 %v291, %v311
        %v317 = vadd.f32 %v292, %v314
        %318 = vst.msk [vmem:[#allocation2] sm:$0xff] %vm257, %v316
        %319 = vst.msk [vmem:[#allocation2 + $0x8] sm:$0xff] %vm257, %v317
        // Predicated region
        $region37: #{tpu_custom_call.1} parent=31 // pred_check
          %p320 = pneg %p228
        $region38: #{tpu_custom_call.1} parent=31 // pred_check_branch
          %322 = sbr.rel (%p320) target = $region40
        $region39: #{tpu_custom_call.1} parent=31 // pred_region
          %v323 = vld [vmem:[#allocation2] sm:$0xff]
          %v324 = vld [vmem:[#allocation2 + $0x8] sm:$0xff]
          %325 = vst.msk [vmem:[%s209] sm:$0xff] %vm257, %v323
          %326 = vst.msk [vmem:[%s209 + $0x8] sm:$0xff] %vm257, %v324
        $region40: #{tpu_custom_call.1} parent=31 // pred_fallthru
          _
        %s327 = sand.u32 %s114, 1
        %s328 = scalar_lea.sflag [#allocation4], %s327
        %s329 = sand.u32 %s114, 1
        %s330 = smul.addr %s329, 16
        %s331 = scalar_lea.vmem [#allocation3], %s330
        // Predicated region
        $region41: #{tpu_custom_call.1} parent=31 // pred_check
          %p332 = pneg %p124
        $region42: #{tpu_custom_call.1} parent=31 // pred_check_branch
          %334 = sbr.rel (%p332) target = $region44
        $region43: #{tpu_custom_call.1} parent=31 // pred_region
          %336 = vsyncadd %s328, 0
          %s337 = smul.addr %s21, 2
          %s338 = smul.addr %s337, 8
          %s339 = scalar_lea.hbm %s3, %s338
          %s340 = sshll.u32 %s331, 4
          %s341 = int_to_ptr.vmem [resolvable:$true] %s340
          %s342 = sshll.u32 %s339, 4
          %s343 = int_to_ptr.hbm [resolvable:$true] %s342
          %348 = dma.vmem_to_hbm [thread:$0]  %s341, 256, %s343, %s328, 128, 128, 8
        $region44: #{tpu_custom_call.1} parent=31 // pred_fallthru
          _
      $region32: #{tpu_custom_call.1} parent=5 // pred_fallthru
        _
      %p349 = scmp.le.s32.totalorder 2, %s12
      // Predicated region
      $region45: #{tpu_custom_call.1} parent=5 // pred_check
        %p350 = pneg %p349
      $region46: #{tpu_custom_call.1} parent=5 // pred_check_branch
        %352 = sbr.rel (%p350) target = $region48
      $region47: #{tpu_custom_call.1} parent=5 // pred_region
        %s353 = ssub.s32 %s12, 2
        // Predicated region
        $region49: #{tpu_custom_call.1} parent=47 // pred_check
          %p354 = pneg %p130
        $region50: #{tpu_custom_call.1} parent=47 // pred_check_branch
          %356 = sbr.rel (%p354) target = $region52
        $region51: #{tpu_custom_call.1} parent=47 // pred_region
          %s357 = sand.u32 %s115, 1
          %s358 = scalar_lea.sflag [#allocation4], %s357
          %s359 = sand.u32 %s115, 1
          %s360 = smul.addr %s359, 16
          %s361 = scalar_lea.vmem [#allocation3], %s360
          %363 = dma.done %s358, 256
        $region52: #{tpu_custom_call.1} parent=47 // pred_fallthru
          _
      $region48: #{tpu_custom_call.1} parent=5 // pred_fallthru
        _
    $region6: #{tpu_custom_call.1} parent=1 // loop_footer
      %s16 = sadd.s32 1, %s12
    $region7: #{tpu_custom_call.1} parent=1 // loop_footer_branch
      %11 = sbr.rel target = $region3
    $region8: #{tpu_custom_call.1} parent=1 // loop_exit
      _
    %364 = vsyncpa [#allocation4], 1
    %s365 = scalar_lea.sflag [#allocation4], 1
    %366 = vsyncpa %s365, 1

</llo_original>
